<compile_context>
chip_gen: v5e
topology: v5e:2x2
jax: 0.10.0
libtpu: 0.0.40
codegen_flags: <defaults>
</compile_context>

<pallas_src>
import functools

import jax
import jax.numpy as jnp
from jax import lax
from jax.experimental import pallas as pl
from jax.experimental.pallas import tpu as pltpu

_NEG_INF = -1e30          # big-but-finite: avoids inf-inf -> NaN in the online rescale
_TARGET_BLOCK_BYTES = 4 * 1024 * 1024   # per pipelined h block (2x buffered ~ 8 MiB)


def _round_up(x, m):
    return ((x + m - 1) // m) * m


def _self_attn_kernel(h_ref, at_ref, bt_ref, o_acc_ref, o_m_ref, o_l_ref,
                      m_sc, l_sc, acc_sc, *, n_valid, tile, steps, need_mask):
    step = pl.program_id(1)

    @pl.when(step == 0)
    def _init():
        m_sc[...] = jnp.full_like(m_sc, _NEG_INF)
        l_sc[...] = jnp.zeros_like(l_sc)
        acc_sc[...] = jnp.zeros_like(acc_sc)

    h = h_ref[...]                                    # (tile, dim), native dtype -> MXU
    if need_mask:  # static: only emitted when the grid over-covers N
        blk = pl.program_id(0) * steps + step         # UNclamped global block index
        row0 = blk * tile
        row = lax.broadcasted_iota(jnp.int32, (tile, 1), 0) + row0
        # Zero invalid rows: garbage in ragged / duplicated tail blocks may be
        # NaN/Inf and 0 * NaN = NaN in the acc matmul below.
        h = jnp.where(row < n_valid, h, jnp.zeros_like(h))

    # sT = tanh(a^T @ h^T): (da_pad, tile).  f32 accumulate on the MXU; tanh on the
    # EUP over only da_pad sublanes (8x less than a 128-lane-padded s).
    sT = jnp.tanh(lax.dot_general(
        at_ref[...], h, dimension_numbers=(((1,), (1,)), ((), ())),
        preferred_element_type=jnp.float32))
    # e = b^T @ sT, lane-dense (1, tile) so softmax + the acc matmul see packed lanes.
    e = jnp.dot(bt_ref[...], sT, preferred_element_type=jnp.float32)
    if need_mask:
        col = lax.broadcasted_iota(jnp.int32, (1, tile), 1) + row0
        e = jnp.where(col < n_valid, e, _NEG_INF)

    # Online-softmax update (numerically stable across tiles).
    m_prev = m_sc[...]                                               # (1, 1)
    m_new = jnp.maximum(m_prev, jnp.max(e, axis=1, keepdims=True))   # (1, 1)
    alpha = jnp.exp(m_prev - m_new)
    p = jnp.exp(e - m_new)                                           # (1, tile)
    l_sc[...] = alpha * l_sc[...] + jnp.sum(p, axis=1, keepdims=True)
    acc_sc[...] = alpha * acc_sc[...] + jnp.dot(
        p.astype(h.dtype), h, preferred_element_type=jnp.float32)    # (1, dim) on MXU
    m_sc[...] = m_new

    @pl.when(step == pl.num_programs(1) - 1)
    def _finalize():   # unnormalised per-split partials; combined exactly in wrapper
        o_acc_ref[0] = acc_sc[...]
        o_m_ref[0] = m_sc[...]
        o_l_ref[0] = l_sc[...]


@functools.partial(jax.jit, static_argnames=("tn",))
def self_attention_layer(h, a, b, *, tn=None):
    N, dim = h.shape
    da = a.shape[1]
    itemsize = jnp.dtype(h.dtype).itemsize
    row_bytes = dim * itemsize

    # --- N-tile: big enough to amortise per-grid-step overhead (~0.35 us), small
    # enough that the double-buffered pair fits every generation's scoped VMEM.
    cap = max(8, (_TARGET_BLOCK_BYTES // row_bytes) // 8 * 8)
    if tn is not None:
        cap = max(8, min(cap, (tn // 8) * 8 if tn >= 8 else 8))
    if N <= cap:
        tile = N          # single block equal to the full array dim (legal for any N)
    else:
        tile = cap        # multiple of 8; last block may be ragged (masked in-kernel)
    num_blocks = pl.cdiv(N, tile)

    # --- Split the N-reduction 2 ways on a leading "parallel" axis (v7x 2nd core;
    # harmless sequential loop on 1-TC chips).
    n_splits = 2 if num_blocks >= 2 else 1
    steps = pl.cdiv(num_blocks, n_splits)
    need_mask = (n_splits * steps * tile) != N

    # --- Weights: pre-transposed aT with da padded only to the sublane quantum
    # (zero rows contribute exactly 0 to e); b as an f32 row vector.
    sublane = 8 * max(1, 4 // itemsize)
    da_pad = _round_up(da, sublane)
    at = jnp.swapaxes(a, 0, 1)                          # (da, dim)
    bt = jnp.reshape(b, (1, da))
    if da_pad != da:
        at = jnp.pad(at, ((0, da_pad - da), (0, 0)))
        bt = jnp.pad(bt, ((0, 0), (0, da_pad - da)))
    at = at.astype(h.dtype)                             # feed the MXU in h's dtype
    bt = bt.astype(jnp.float32)

    kernel = functools.partial(_self_attn_kernel, n_valid=N, tile=tile,
                               steps=steps, need_mask=need_mask)

    cost = pl.CostEstimate(
        flops=int(2 * N * dim * da_pad + 2 * N * da_pad + 2 * N * dim),
        transcendentals=int(N * da_pad + 2 * N),
        bytes_accessed=int(N * dim * itemsize + da_pad * dim * itemsize
                           + da_pad * 4 + n_splits * (dim + 2) * 4),
    )

    pacc, pm, plse = pl.pallas_call(
        kernel,
        out_shape=(
            jax.ShapeDtypeStruct((n_splits, 1, dim), jnp.float32),  # unnormalised sum
            jax.ShapeDtypeStruct((n_splits, 1, 1), jnp.float32),    # running max m
            jax.ShapeDtypeStruct((n_splits, 1, 1), jnp.float32),    # running denom l
        ),
        grid_spec=pltpu.PrefetchScalarGridSpec(
            num_scalar_prefetch=0,
            grid=(n_splits, steps),
            in_specs=[
                # h tile (pipelined).  The block index is clamped so duplicated tail
                # blocks stay in-bounds; they are fully masked in-kernel using the
                # UNclamped row index.
                pl.BlockSpec((tile, dim),
                             lambda c, i: (jnp.minimum(c * steps + i,
                                                       num_blocks - 1), 0)),
                pl.BlockSpec((da_pad, dim), lambda c, i: (0, 0)),   # aT (resident)
                pl.BlockSpec((1, da_pad), lambda c, i: (0, 0)),     # b^T (resident)
            ],
            out_specs=[
                pl.BlockSpec((1, 1, dim), lambda c, i: (c, 0, 0)),
                pl.BlockSpec((1, 1, 1), lambda c, i: (c, 0, 0)),
                pl.BlockSpec((1, 1, 1), lambda c, i: (c, 0, 0)),
            ],
            scratch_shapes=[
                pltpu.VMEM((1, 1), jnp.float32),    # running max  m
                pltpu.VMEM((1, 1), jnp.float32),    # running denom l
                pltpu.VMEM((1, dim), jnp.float32),  # weighted-sum accumulator
            ],
        ),
        compiler_params=pltpu.CompilerParams(
            dimension_semantics=("parallel", "arbitrary"),
            vmem_limit_bytes=32 * 1024 * 1024,
        ),
        cost_estimate=cost,
    )(h, at, bt)

    # --- Exact combine of the per-split online-softmax states (tiny f32 epilogue).
    # Splits that saw no valid rows keep m = -1e30, so their scale is exactly 0.
    pm = pm[:, 0, 0]                         # (n_splits,)
    plse = plse[:, 0, 0]                     # (n_splits,)
    pacc = pacc[:, 0, :]                     # (n_splits, dim)
    m_glob = jnp.max(pm)
    scale = jnp.exp(pm - m_glob)             # (n_splits,)
    denom = jnp.sum(plse * scale)
    num = jnp.sum(pacc * scale[:, None], axis=0)
    return (num / denom).astype(h.dtype)     # (dim,), matches torch.matmul(attention, h)


def xavier_uniform(key, shape, gain):
    fan_in, fan_out = shape[0], shape[1]
    bound = gain * jnp.sqrt(6.0 / (fan_in + fan_out))
    return jax.random.uniform(key, shape, minval=-bound, maxval=bound,
                              dtype=jnp.float32)


def reference(h, a, b):
    e = jnp.squeeze(jnp.matmul(jnp.tanh(jnp.matmul(h, a)), b), axis=1)
    attention = jax.nn.softmax(e, axis=-1)
    return jnp.matmul(attention, h)


if __name__ == "__main__":
    # Small shapes consistent with the module: h (N, dim), a (dim, da), b (da, 1).
    N, dim, da = 8, 32, 16
    k_h, k_a, k_b = jax.random.split(jax.random.PRNGKey(0), 3)
    h = jax.random.normal(k_h, (N, dim), dtype=jnp.float32)
    a = xavier_uniform(k_a, (dim, da), gain=1.414)
    b = xavier_uniform(k_b, (da, 1), gain=1.414)
    out = self_attention_layer(h, a, b)
    jax.block_until_ready(out)
    ref = reference(h, a, b)
    assert out.shape == (dim,)
    assert jnp.allclose(out, ref, atol=2e-3, rtol=2e-3), (out, ref)

    # Larger N that is not a multiple of 8: auto tile -> single full-array block.
    N2, dim2, da2 = 1050, 128, 16
    k_h2, k_a2, k_b2 = jax.random.split(jax.random.PRNGKey(1), 3)
    h2 = jax.random.normal(k_h2, (N2, dim2), dtype=jnp.float32)
    a2 = xavier_uniform(k_a2, (dim2, da2), gain=1.414)
    b2 = xavier_uniform(k_b2, (da2, 1), gain=1.414)
    out2 = self_attention_layer(h2, a2, b2)
    jax.block_until_ready(out2)
    ref2 = reference(h2, a2, b2)
    assert out2.shape == (dim2,)
    assert jnp.allclose(out2, ref2, atol=2e-3, rtol=2e-3), (out2, ref2)

    # Same data with a small explicit tile: exercises the multi-tile online-softmax
    # path, the 2-way core split, ragged-tail masking and clamped duplicate blocks.
    out3 = self_attention_layer(h2, a2, b2, tn=256)
    jax.block_until_ready(out3)
    assert jnp.allclose(out3, ref2, atol=2e-3, rtol=2e-3), (out3, ref2)

    print("KERNEL_OK")
</pallas_src>

<mosaic_0001>
module attributes {stable_mosaic.version = 11 : i64} {
  func.func @_self_attn_kernel(%arg0: i32, %arg1: i32, %arg2: memref<8x32xf32, #tpu.memory_space<vmem>>, %arg3: memref<16x32xf32, #tpu.memory_space<vmem>>, %arg4: memref<1x16xf32, #tpu.memory_space<vmem>>, %arg5: memref<1x1x32xf32, #tpu.memory_space<vmem>>, %arg6: memref<1x1x1xf32, #tpu.memory_space<vmem>>, %arg7: memref<1x1x1xf32, #tpu.memory_space<vmem>>, %arg8: memref<1x1xf32, #tpu.memory_space<vmem>>, %arg9: memref<1x1xf32, #tpu.memory_space<vmem>>, %arg10: memref<1x32xf32, #tpu.memory_space<vmem>>) attributes {dimension_semantics = [#tpu.dimension_semantics<parallel>, #tpu.dimension_semantics<arbitrary>], iteration_bounds = array<i64: 1, 1>, scalar_prefetch = 0 : i64, scratch_operands = 3 : i64, tpu.core_type = #tpu.core_type<tc>, window_params = [{transform_indices = @transform_0, window_bounds = array<i64: 8, 32>}, {pipeline_mode = #tpu.pipeline_mode<synchronous>, transform_indices = @transform_1, window_bounds = array<i64: 16, 32>}, {pipeline_mode = #tpu.pipeline_mode<synchronous>, transform_indices = @transform_2, window_bounds = array<i64: 1, 16>}, {transform_indices = @transform_3, window_bounds = array<i64: 1, 1, 32>}, {transform_indices = @transform_4, window_bounds = array<i64: 1, 1, 1>}, {transform_indices = @transform_5, window_bounds = array<i64: 1, 1, 1>}]} {
    %c0_i32 = arith.constant 0 : i32
    %0 = arith.cmpi eq, %arg1, %c0_i32 : i32
    %1 = arith.extui %0 : i1 to i32
    %c0_i32_0 = arith.constant 0 : i32
    %2 = arith.cmpi ne, %1, %c0_i32_0 : i32
    scf.if %2 {
      %cst_24 = arith.constant -1.000000e+30 : f32
      %34 = vector.broadcast %cst_24 : f32 to vector<1x1xf32>
      %c0_25 = arith.constant 0 : index
      %c0_26 = arith.constant 0 : index
      %35 = vector.load %arg8[%c0_25, %c0_26] : memref<1x1xf32, #tpu.memory_space<vmem>>, vector<1x1xf32>
      tpu.vector_store %arg8[%c0_25, %c0_26], %34 {strides = array<i32>} : memref<1x1xf32, #tpu.memory_space<vmem>>, vector<1x1xf32>,
      %cst_27 = arith.constant 0.000000e+00 : f32
      %36 = vector.broadcast %cst_27 : f32 to vector<1x1xf32>
      %c0_28 = arith.constant 0 : index
      %c0_29 = arith.constant 0 : index
      %37 = vector.load %arg9[%c0_28, %c0_29] : memref<1x1xf32, #tpu.memory_space<vmem>>, vector<1x1xf32>
      tpu.vector_store %arg9[%c0_28, %c0_29], %36 {strides = array<i32>} : memref<1x1xf32, #tpu.memory_space<vmem>>, vector<1x1xf32>,
      %cst_30 = arith.constant 0.000000e+00 : f32
      %38 = vector.broadcast %cst_30 : f32 to vector<1x32xf32>
      %c0_31 = arith.constant 0 : index
      %c0_32 = arith.constant 0 : index
      %39 = vector.load %arg10[%c0_31, %c0_32] : memref<1x32xf32, #tpu.memory_space<vmem>>, vector<1x32xf32>
      tpu.vector_store %arg10[%c0_31, %c0_32], %38 {strides = array<i32>} : memref<1x32xf32, #tpu.memory_space<vmem>>, vector<1x32xf32>,
    } else {
    }
    %c0 = arith.constant 0 : index
    %c0_1 = arith.constant 0 : index
    %3 = vector.load %arg2[%c0, %c0_1] : memref<8x32xf32, #tpu.memory_space<vmem>>, vector<8x32xf32>
    %c0_2 = arith.constant 0 : index
    %c0_3 = arith.constant 0 : index
    %4 = vector.load %arg3[%c0_2, %c0_3] : memref<16x32xf32, #tpu.memory_space<vmem>>, vector<16x32xf32>
    %cst = arith.constant dense<0.000000e+00> : vector<16x8xf32>
    %5 = tpu.matmul %4, %3, %cst {dimension_numbers = #tpu.dot_dimension_numbers<[1], [1], [0], [0], [0, 0, 1, 0], [], []>} : vector<16x32xf32>, vector<8x32xf32>, vector<16x8xf32> -> vector<16x8xf32>
    %6 = math.tanh %5 : vector<16x8xf32>
    %c0_4 = arith.constant 0 : index
    %c0_5 = arith.constant 0 : index
    %7 = vector.load %arg4[%c0_4, %c0_5] : memref<1x16xf32, #tpu.memory_space<vmem>>, vector<1x16xf32>
    %cst_6 = arith.constant dense<0.000000e+00> : vector<1x8xf32>
    %8 = tpu.matmul %7, %6, %cst_6 {dimension_numbers = #tpu.dot_dimension_numbers<[1], [0], [0], [1], [0, 0, 1, 1], [], []>} : vector<1x16xf32>, vector<16x8xf32>, vector<1x8xf32> -> vector<1x8xf32>
    %c0_7 = arith.constant 0 : index
    %c0_8 = arith.constant 0 : index
    %9 = vector.load %arg8[%c0_7, %c0_8] : memref<1x1xf32, #tpu.memory_space<vmem>>, vector<1x1xf32>
    %cst_9 = arith.constant dense<0xFF800000> : vector<1xf32>
    %10 = vector.multi_reduction <maximumf>, %8, %cst_9 [1] : vector<1x8xf32> to vector<1xf32>
    %11 = vector.shape_cast %10 : vector<1xf32> to vector<1x1xf32>
    %12 = arith.maximumf %9, %11 : vector<1x1xf32>
    %13 = arith.subf %9, %12 : vector<1x1xf32>
    %14 = math.exp %13 : vector<1x1xf32>
    %15 = vector.broadcast %12 : vector<1x1xf32> to vector<1x8xf32>
    %16 = arith.subf %8, %15 : vector<1x8xf32>
    %17 = math.exp %16 : vector<1x8xf32>
    %c0_10 = arith.constant 0 : index
    %c0_11 = arith.constant 0 : index
    %18 = vector.load %arg9[%c0_10, %c0_11] : memref<1x1xf32, #tpu.memory_space<vmem>>, vector<1x1xf32>
    %19 = arith.mulf %14, %18 : vector<1x1xf32>
    %cst_12 = arith.constant dense<0.000000e+00> : vector<1xf32>
    %20 = vector.multi_reduction <add>, %17, %cst_12 [1] : vector<1x8xf32> to vector<1xf32>
    %21 = vector.shape_cast %20 : vector<1xf32> to vector<1x1xf32>
    %22 = arith.addf %19, %21 : vector<1x1xf32>
    %c0_13 = arith.constant 0 : index
    %c0_14 = arith.constant 0 : index
    %23 = vector.load %arg9[%c0_13, %c0_14] : memref<1x1xf32, #tpu.memory_space<vmem>>, vector<1x1xf32>
    tpu.vector_store %arg9[%c0_13, %c0_14], %22 {strides = array<i32>} : memref<1x1xf32, #tpu.memory_space<vmem>>, vector<1x1xf32>,
    %c0_15 = arith.constant 0 : index
    %c0_16 = arith.constant 0 : index
    %24 = vector.load %arg10[%c0_15, %c0_16] : memref<1x32xf32, #tpu.memory_space<vmem>>, vector<1x32xf32>
    %25 = vector.broadcast %14 : vector<1x1xf32> to vector<1x32xf32>
    %26 = arith.mulf %25, %24 : vector<1x32xf32>
    %cst_17 = arith.constant dense<0.000000e+00> : vector<1x32xf32>
    %27 = tpu.matmul %17, %3, %cst_17 {dimension_numbers = #tpu.dot_dimension_numbers<[1], [0], [0], [1], [0, 0, 1, 1], [], []>} : vector<1x8xf32>, vector<8x32xf32>, vector<1x32xf32> -> vector<1x32xf32>
    %28 = arith.addf %26, %27 : vector<1x32xf32>
    %c0_18 = arith.constant 0 : index
    %c0_19 = arith.constant 0 : index
    %29 = vector.load %arg10[%c0_18, %c0_19] : memref<1x32xf32, #tpu.memory_space<vmem>>, vector<1x32xf32>
    tpu.vector_store %arg10[%c0_18, %c0_19], %28 {strides = array<i32>} : memref<1x32xf32, #tpu.memory_space<vmem>>, vector<1x32xf32>,
    %c0_20 = arith.constant 0 : index
    %c0_21 = arith.constant 0 : index
    %30 = vector.load %arg8[%c0_20, %c0_21] : memref<1x1xf32, #tpu.memory_space<vmem>>, vector<1x1xf32>
    tpu.vector_store %arg8[%c0_20, %c0_21], %12 {strides = array<i32>} : memref<1x1xf32, #tpu.memory_space<vmem>>, vector<1x1xf32>,
    %c0_i32_22 = arith.constant 0 : i32
    %31 = arith.cmpi eq, %arg1, %c0_i32_22 : i32
    %32 = arith.extui %31 : i1 to i32
    %c0_i32_23 = arith.constant 0 : i32
    %33 = arith.cmpi ne, %32, %c0_i32_23 : i32
    scf.if %33 {
      %c0_24 = arith.constant 0 : index
      %c0_25 = arith.constant 0 : index
      %34 = vector.load %arg10[%c0_24, %c0_25] : memref<1x32xf32, #tpu.memory_space<vmem>>, vector<1x32xf32>
      %c0_26 = arith.constant 0 : index
      %c0_27 = arith.constant 0 : index
      %c0_28 = arith.constant 0 : index
      %35 = vector.load %arg5[%c0_26, %c0_27, %c0_28] : memref<1x1x32xf32, #tpu.memory_space<vmem>>, vector<1x1x32xf32>
      %36 = vector.shape_cast %35 : vector<1x1x32xf32> to vector<1x32xf32>
      %37 = vector.shape_cast %34 : vector<1x32xf32> to vector<1x1x32xf32>
      tpu.vector_store %arg5[%c0_26, %c0_27, %c0_28], %37 {strides = array<i32>} : memref<1x1x32xf32, #tpu.memory_space<vmem>>, vector<1x1x32xf32>,
      %c0_29 = arith.constant 0 : index
      %c0_30 = arith.constant 0 : index
      %38 = vector.load %arg8[%c0_29, %c0_30] : memref<1x1xf32, #tpu.memory_space<vmem>>, vector<1x1xf32>
      %c0_31 = arith.constant 0 : index
      %c0_32 = arith.constant 0 : index
      %c0_33 = arith.constant 0 : index
      %39 = vector.load %arg6[%c0_31, %c0_32, %c0_33] : memref<1x1x1xf32, #tpu.memory_space<vmem>>, vector<1x1x1xf32>
      %40 = vector.shape_cast %39 : vector<1x1x1xf32> to vector<1x1xf32>
      %41 = vector.shape_cast %38 : vector<1x1xf32> to vector<1x1x1xf32>
      tpu.vector_store %arg6[%c0_31, %c0_32, %c0_33], %41 {strides = array<i32>} : memref<1x1x1xf32, #tpu.memory_space<vmem>>, vector<1x1x1xf32>,
      %c0_34 = arith.constant 0 : index
      %c0_35 = arith.constant 0 : index
      %42 = vector.load %arg9[%c0_34, %c0_35] : memref<1x1xf32, #tpu.memory_space<vmem>>, vector<1x1xf32>
      %c0_36 = arith.constant 0 : index
      %c0_37 = arith.constant 0 : index
      %c0_38 = arith.constant 0 : index
      %43 = vector.load %arg7[%c0_36, %c0_37, %c0_38] : memref<1x1x1xf32, #tpu.memory_space<vmem>>, vector<1x1x1xf32>
      %44 = vector.shape_cast %43 : vector<1x1x1xf32> to vector<1x1xf32>
      %45 = vector.shape_cast %42 : vector<1x1xf32> to vector<1x1x1xf32>
      tpu.vector_store %arg7[%c0_36, %c0_37, %c0_38], %45 {strides = array<i32>} : memref<1x1x1xf32, #tpu.memory_space<vmem>>, vector<1x1x1xf32>,
    } else {
    }
    return
  }
  func.func @transform_0(%arg0: i32, %arg1: i32) -> (i32, i32) {
    %c1_i32 = arith.constant 1 : i32
    %0 = arith.muli %arg0, %c1_i32 : i32
    %1 = arith.addi %0, %arg1 : i32
    %c0_i32 = arith.constant 0 : i32
    %2 = arith.minsi %1, %c0_i32 : i32
    %c0_i32_0 = arith.constant 0 : i32
    %c0_i32_1 = arith.constant 0 : i32
    return %2, %c0_i32_0 : i32, i32
  }
  func.func @transform_1(%arg0: i32, %arg1: i32) -> (i32, i32) {
    %c0_i32 = arith.constant 0 : i32
    %c0_i32_0 = arith.constant 0 : i32
    %c0_i32_1 = arith.constant 0 : i32
    return %c0_i32, %c0_i32_0 : i32, i32
  }
  func.func @transform_2(%arg0: i32, %arg1: i32) -> (i32, i32) {
    %c0_i32 = arith.constant 0 : i32
    %c0_i32_0 = arith.constant 0 : i32
    %c0_i32_1 = arith.constant 0 : i32
    return %c0_i32, %c0_i32_0 : i32, i32
  }
  func.func @transform_3(%arg0: i32, %arg1: i32) -> (i32, i32, i32) {
    %c0_i32 = arith.constant 0 : i32
    %c0_i32_0 = arith.constant 0 : i32
    %c0_i32_1 = arith.constant 0 : i32
    return %arg0, %c0_i32, %c0_i32_0 : i32, i32, i32
  }
  func.func @transform_4(%arg0: i32, %arg1: i32) -> (i32, i32, i32) {
    %c0_i32 = arith.constant 0 : i32
    %c0_i32_0 = arith.constant 0 : i32
    %c0_i32_1 = arith.constant 0 : i32
    return %arg0, %c0_i32, %c0_i32_0 : i32, i32, i32
  }
  func.func @transform_5(%arg0: i32, %arg1: i32) -> (i32, i32, i32) {
    %c0_i32 = arith.constant 0 : i32
    %c0_i32_0 = arith.constant 0 : i32
    %c0_i32_1 = arith.constant 0 : i32
    return %arg0, %c0_i32, %c0_i32_0 : i32, i32, i32
  }
}

</mosaic_0001>

<llo_original>
// kernel: self_attention_layer.1
$region0: #{self_attention_layer.1}
  #allocation0 [shape = 'u32[]', space=smem, size = 0x4, offset = 0x4, fixed_abs, tag = 'smem constant byte address 0x4 - core index']
  #allocation1 [shape = 'u32[72,128]{1,0:T(1,128)}', space=vmem, size = 0x9000, scoped, tag = 'internal scratch']
  #allocation2 [shape = 'f32[1,1]{1,0:T(1,128)}', space=vmem, size = 0x200, scoped, tag = 'scratch operand']
  #allocation3 [shape = 'f32[1,1]{1,0:T(1,128)}', space=vmem, size = 0x200, scoped, tag = 'scratch operand']
  #allocation4 [shape = 'f32[1,32]{1,0:T(1,128)}', space=vmem, size = 0x200, scoped, tag = 'scratch operand']
  %s0 = inlined_call_operand.hbm [shape: f32[8,32], index: 0, kind: input, shape index: {}]
  %s1 = inlined_call_operand.hbm [shape: f32[16,32], index: 1, kind: input, shape index: {}]
  %s2 = inlined_call_operand.vmem [shape: f32[1,16], index: 2, kind: input, shape index: {}]
  %s3 = inlined_call_operand.vmem [shape: f32[1,1,32], index: 3, kind: output, shape index: {0}]
  %s4 = inlined_call_operand.hbm [shape: f32[1,1,1], index: 4, kind: output, shape index: {1}]
  %s5 = inlined_call_operand.hbm [shape: f32[1,1,1], index: 5, kind: output, shape index: {2}]
  %6 = xla_tuple %s3, %s4, %s5
  %s7 = sld [smem:[#allocation0]]
  $region54: #{self_attention_layer.1} parent=0
    _
  %s9 = ssub.s32 1, %s7
  %s10 = scalar_select 0, %s9, %s7
  $region1: #{self_attention_layer.1} parent=0
    #allocation5 [shape = 'u8[4096]{0}', space=vmem, size = 0x1000, scoped, tag = 'input window, operand 0, single buffered']
    #allocation6 [shape = 's32[1]{0}', space=sflag, size = 0x4, scoped, tag = 'scoped memory for self_attention_layer.1']
    #allocation7 [shape = 's32[1]{0}', space=sflag, size = 0x4, scoped, tag = 'scoped memory for self_attention_layer.1']
    #allocation8 [shape = 'u8[8192]{0}', space=vmem, size = 0x2000, scoped, tag = 'input window, operand 1, single buffered']
    #allocation9 [shape = 's32[1]{0}', space=sflag, size = 0x4, scoped, tag = 'scoped memory for self_attention_layer.1']
    #allocation10 [shape = 'u8[512]{0}', space=vmem, size = 0x400, scoped, tag = 'output window, operand 1, single buffered']
    #allocation11 [shape = 'u8[512]{0}', space=vmem, size = 0x400, scoped, tag = 'output window, operand 2, single buffered']
    #allocation12 [shape = 's32[1]{0}', space=sflag, size = 0x4, scoped, tag = 'scoped memory for self_attention_layer.1']
    %11 = vsyncpa [#allocation6], 0
    %12 = vsyncpa [#allocation9], 0
    %13 = vsyncpa [#allocation7], 0
    %14 = vsyncpa [#allocation12], 0
    // Predicated region
    $region2: #{self_attention_layer.1} parent=1 // pred_check
      _
    $region3: #{self_attention_layer.1} parent=1 // pred_check_branch
      %16 = sbr.rel (0) target = $region5
    $region4: #{self_attention_layer.1} parent=1 // pred_region
      %s17 = sadd.s32 0, 0
      %p18 = scmp.lt.s32.totalorder %s17, 0
      %s19 = scalar_select %p18, %s17, 0
      %21 = vsyncadd [#allocation6], 0
      %s22 = smul.addr %s19, 8
      %s23 = scalar_lea.hbm %s0, %s22
      %s25 = sshll.u32 %s23, 4
      %s26 = int_to_ptr.hbm [resolvable:$true] %s25
      %s27 = sshll.u32 [#allocation5], 4
      %s28 = int_to_ptr.vmem [resolvable:$true] %s27
      %30 = dma.hbm_to_vmem [thread:$0]  %s26, 128, %s28, [#allocation6]
    $region5: #{self_attention_layer.1} parent=1 // pred_fallthru
      _
    // Predicated region
    $region6: #{self_attention_layer.1} parent=1 // pred_check
      _
    $region7: #{self_attention_layer.1} parent=1 // pred_check_branch
      %32 = sbr.rel (0) target = $region9
    $region8: #{self_attention_layer.1} parent=1 // pred_region
      %34 = vsyncadd [#allocation9], 0
      %s35 = sshll.u32 %s1, 4
      %s36 = int_to_ptr.hbm [resolvable:$true] %s35
      %s37 = sshll.u32 [#allocation8], 4
      %s38 = int_to_ptr.vmem [resolvable:$true] %s37
      %43 = dma.hbm_to_vmem [thread:$0]  %s36, 256, %s38, [#allocation9], 128, 128, 8
    $region9: #{self_attention_layer.1} parent=1 // pred_fallthru
      _
    // Predicated region
    $region10: #{self_attention_layer.1} parent=1 // pred_check
      _
    $region11: #{self_attention_layer.1} parent=1 // pred_check_branch
      %45 = sbr.rel (0) target = $region13
    $region12: #{self_attention_layer.1} parent=1 // pred_region
      _
    $region13: #{self_attention_layer.1} parent=1 // pred_fallthru
      _
    // Predicated region
    $region14: #{self_attention_layer.1} parent=1 // pred_check
      _
    $region15: #{self_attention_layer.1} parent=1 // pred_check_branch
      %47 = sbr.rel (0) target = $region17
    $region16: #{self_attention_layer.1} parent=1 // pred_region
      %49 = dma.done [#allocation6], 128
    $region17: #{self_attention_layer.1} parent=1 // pred_fallthru
      _
    // Predicated region
    $region18: #{self_attention_layer.1} parent=1 // pred_check
      _
    $region19: #{self_attention_layer.1} parent=1 // pred_check_branch
      %51 = sbr.rel (0) target = $region21
    $region20: #{self_attention_layer.1} parent=1 // pred_region
      %53 = dma.done [#allocation9], 256
    $region21: #{self_attention_layer.1} parent=1 // pred_fallthru
      _
    %s54 = sadd.s32 0, 0
    %p55 = scmp.lt.s32.totalorder %s54, 0
    %s56 = scalar_select %p55, %s54, 0
    %p57 = scmp.eq.s32.totalorder 0, 0
    // Predicated region
    $region22: #{self_attention_layer.1} parent=1 // pred_check
      %p58 = pneg %p57
    $region23: #{self_attention_layer.1} parent=1 // pred_check_branch
      %60 = sbr.rel (%p58) target = $region25
    $region24: #{self_attention_layer.1} parent=1 // pred_region
      %vm61 = vcmask 0
      %62 = vst.msk [vmem:[#allocation2] sm:$0x1] %vm61, -1e+30
      %63 = vst.msk [vmem:[#allocation3] sm:$0x1] %vm61, 0.0
      %vm64 = vcmask 253952
      %65 = vst.msk [vmem:[#allocation4] sm:$0x1] %vm64, 0.0
    $region25: #{self_attention_layer.1} parent=1 // pred_fallthru
      _
    %v66 = vld [vmem:[#allocation5] sm:$0xff]
    %v67 = vld [vmem:[#allocation8] sm:$0xff]
    %v68 = vld [vmem:[#allocation8 + $0x8] sm:$0xff]
    %vm69 = vcmask 261120
    %v71 = vsel %vm69, %v67, 0
    %v74 = vsel %vm69, %v68, 0
    %v77 = vsel %vm69, %v66, 0
    %79 = vmatpush.xpose.msra.mxu0 0.0
    %80 = vmatpush.xpose.msra.mxu0 0.0
    %81 = vmatpush.xpose.msra.mxu0 0.0
    %82 = vmatpush.xpose.msra.mxu0 0.0
    %83 = vmatpush.xpose.msra.mxu0 0.0
    %84 = vmatpush.xpose.msra.mxu0 0.0
    %85 = vmatpush.xpose.msra.mxu0 0.0
    %86 = vmatpush.xpose.msra.mxu0 0.0
    %87 = vmatpush.xpose.msra.mxu0 0.0
    %88 = vmatpush.xpose.msra.mxu0 0.0
    %89 = vmatpush.xpose.msra.mxu0 0.0
    %90 = vmatpush.xpose.msra.mxu0 0.0
    %91 = vmatpush.xpose.msra.mxu0 0.0
    %92 = vmatpush.xpose.msra.mxu0 0.0
    %93 = vmatpush.xpose.msra.mxu0 0.0
    %94 = vmatpush.xpose.msra.mxu0 %v77
    %95 = vmatmul.f32.gmra.mxu0 %v71
    %v96 = vpop.f32.mrf.mxu0
    %v97 = vadd.f32 0.0, %v96
    %98 = vmatmul.f32.gmra.mxu0 %v74
    %v99 = vpop.f32.mrf.mxu0
    %v100 = vadd.f32 0.0, %v99
    %101 = vdwg.mxu0
    %v102 = vtanh.pop %v97
    %v103 = vtanh.pop %v100
    %v104 = vld [vmem:[%s2] sm:$0x1]
    %vm105 = vcmask 130048
    %v107 = vsel %vm105, %v104, 0
    %109 = vmatpush.msra.mxu0 0.0
    %110 = vmatpush.msra.mxu0 0.0
    %111 = vmatpush.msra.mxu0 0.0
    %112 = vmatpush.msra.mxu0 0.0
    %113 = vmatpush.msra.mxu0 0.0
    %114 = vmatpush.msra.mxu0 0.0
    %115 = vmatpush.msra.mxu0 0.0
    %116 = vmatpush.msra.mxu0 0.0
    %117 = vmatpush.msra.mxu0 0.0
    %118 = vmatpush.msra.mxu0 0.0
    %119 = vmatpush.msra.mxu0 0.0
    %120 = vmatpush.msra.mxu0 0.0
    %121 = vmatpush.msra.mxu0 0.0
    %122 = vmatpush.msra.mxu0 0.0
    %123 = vmatpush.msra.mxu0 %v103
    %124 = vmatpush.msra.mxu0 %v102
    %125 = vmatmul.f32.gmra.mxu0 %v107
    %v126 = vpop.f32.mrf.mxu0
    %v127 = vadd.f32 0.0, %v126
    %128 = vdwg.mxu0
    %v129 = vld [vmem:[#allocation2] sm:$0x1]
    %vm130 = vcmask 57344
    %v131 = vsel %vm130, %v127, -inf
    %132 = vmax.xlane.f32.xlu0 %v131
    %v133 = vpop.xlane.xlu0 %132
    %v134 = vmax.f32 %v129, %v133
    %v135 = vsub.f32 %v129, %v134
    %v136 = vmul.f32 %v135, 1.442695
    %v137 = vpow.pop %v136
    %139 = vset.pattern.permute.xlu0 0
    %140 = vperm.xlu0 %139, %v134
    %v141 = vpop.permute.xlu0 %140
    %v143 = vperm.slane %v141, 0
    %v144 = vsub.f32 %v127, %v143
    %v145 = vmul.f32 %v144, 1.442695
    %v146 = vpow.pop %v145
    %v147 = vld [vmem:[#allocation3] sm:$0x1]
    %v148 = vmul.f32 %v137, %v147
    %v149 = vsel %vm130, %v146, 0.0
    %150 = vadd.xlane.f32.xlu0 %v149
    %v151 = vpop.xlane.xlu0 %150
    %v152 = vadd.f32 %v148, %v151
    %vm153 = vcmask 0
    %154 = vst.msk [vmem:[#allocation3] sm:$0x1] %vm153, %v152
    %v155 = vld [vmem:[#allocation4] sm:$0x1]
    %157 = vset.pattern.permute.xlu0 0
    %158 = vperm.xlu0 %157, %v137
    %v159 = vpop.permute.xlu0 %158
    %v161 = vperm.slane %v159, 0
    %v162 = vmul.f32 %v161, %v155
    %vm163 = vcmask 64512
    %v165 = vsel %vm163, %v146, 0
    %167 = vmatpush.msra.mxu0 0.0
    %168 = vmatpush.msra.mxu0 0.0
    %169 = vmatpush.msra.mxu0 0.0
    %170 = vmatpush.msra.mxu0 0.0
    %171 = vmatpush.msra.mxu0 0.0
    %172 = vmatpush.msra.mxu0 0.0
    %173 = vmatpush.msra.mxu0 0.0
    %174 = vmatpush.msra.mxu0 0.0
    %175 = vmatpush.msra.mxu0 0.0
    %176 = vmatpush.msra.mxu0 0.0
    %177 = vmatpush.msra.mxu0 0.0
    %178 = vmatpush.msra.mxu0 0.0
    %179 = vmatpush.msra.mxu0 0.0
    %180 = vmatpush.msra.mxu0 0.0
    %181 = vmatpush.msra.mxu0 0.0
    %182 = vmatpush.msra.mxu0 %v66
    %183 = vmatmul.f32.gmra.mxu0 %v165
    %v184 = vpop.f32.mrf.mxu0
    %v185 = vadd.f32 0.0, %v184
    %186 = vdwg.mxu0
    %v187 = vadd.f32 %v162, %v185
    %vm188 = vcmask 253952
    %189 = vst.msk [vmem:[#allocation4] sm:$0x1] %vm188, %v187
    %190 = vst.msk [vmem:[#allocation2] sm:$0x1] %vm153, %v134
    // Predicated region
    $region26: #{self_attention_layer.1} parent=1 // pred_check
      %p191 = pneg %p57
    $region27: #{self_attention_layer.1} parent=1 // pred_check_branch
      %193 = sbr.rel (%p191) target = $region29
    $region28: #{self_attention_layer.1} parent=1 // pred_region
      %v194 = vld [vmem:[#allocation4] sm:$0x1]
      %195 = vst.msk [vmem:[%s3] sm:$0x1] %vm188, %v194
      %v196 = vld [vmem:[#allocation2] sm:$0x1]
      %197 = vst.msk [vmem:[#allocation10] sm:$0x1] %vm153, %v196
      %v198 = vld [vmem:[#allocation3] sm:$0x1]
      %199 = vst.msk [vmem:[#allocation11] sm:$0x1] %vm153, %v198
    $region29: #{self_attention_layer.1} parent=1 // pred_fallthru
      _
    // Predicated region
    $region30: #{self_attention_layer.1} parent=1 // pred_check
      _
    $region31: #{self_attention_layer.1} parent=1 // pred_check_branch
      %201 = sbr.rel (0) target = $region33
    $region32: #{self_attention_layer.1} parent=1 // pred_region
      _
    $region33: #{self_attention_layer.1} parent=1 // pred_fallthru
      _
    // Predicated region
    $region34: #{self_attention_layer.1} parent=1 // pred_check
      _
    $region35: #{self_attention_layer.1} parent=1 // pred_check_branch
      %203 = sbr.rel (0) target = $region37
    $region36: #{self_attention_layer.1} parent=1 // pred_region
      %205 = vsyncadd [#allocation7], 0
      %s207 = sshll.u32 [#allocation10], 4
      %s208 = int_to_ptr.vmem [resolvable:$true] %s207
      %s209 = sshll.u32 %s4, 4
      %s210 = int_to_ptr.hbm [resolvable:$true] %s209
      %212 = dma.vmem_to_hbm [thread:$0]  %s208, 16, %s210, [#allocation7]
    $region37: #{self_attention_layer.1} parent=1 // pred_fallthru
      _
    // Predicated region
    $region38: #{self_attention_layer.1} parent=1 // pred_check
      _
    $region39: #{self_attention_layer.1} parent=1 // pred_check_branch
      %214 = sbr.rel (0) target = $region41
    $region40: #{self_attention_layer.1} parent=1 // pred_region
      %216 = vsyncadd [#allocation12], 0
      %s218 = sshll.u32 [#allocation11], 4
      %s219 = int_to_ptr.vmem [resolvable:$true] %s218
      %s220 = sshll.u32 %s5, 4
      %s221 = int_to_ptr.hbm [resolvable:$true] %s220
      %223 = dma.vmem_to_hbm [thread:$0]  %s219, 16, %s221, [#allocation12]
    $region41: #{self_attention_layer.1} parent=1 // pred_fallthru
      _
    // Predicated region
    $region42: #{self_attention_layer.1} parent=1 // pred_check
      _
    $region43: #{self_attention_layer.1} parent=1 // pred_check_branch
      %225 = sbr.rel (0) target = $region45
    $region44: #{self_attention_layer.1} parent=1 // pred_region
      _
    $region45: #{self_attention_layer.1} parent=1 // pred_fallthru
      _
    // Predicated region
    $region46: #{self_attention_layer.1} parent=1 // pred_check
      _
    $region47: #{self_attention_layer.1} parent=1 // pred_check_branch
      %227 = sbr.rel (0) target = $region49
    $region48: #{self_attention_layer.1} parent=1 // pred_region
      %229 = dma.done [#allocation7], 16
    $region49: #{self_attention_layer.1} parent=1 // pred_fallthru
      _
    // Predicated region
    $region50: #{self_attention_layer.1} parent=1 // pred_check
      _
    $region51: #{self_attention_layer.1} parent=1 // pred_check_branch
      %231 = sbr.rel (0) target = $region53
    $region52: #{self_attention_layer.1} parent=1 // pred_region
      %233 = dma.done [#allocation12], 16
    $region53: #{self_attention_layer.1} parent=1 // pred_fallthru
      _
    %234 = vsyncpa [#allocation6], 1
    %235 = vsyncpa [#allocation9], 1
    %236 = vsyncpa [#allocation7], 1
    %237 = vsyncpa [#allocation12], 1

</llo_original>
